<compile_context>
chip_gen: v7x
topology: tpu7x:2x2x1
jax: 0.10.0
libtpu: 0.0.40
codegen_flags: <defaults>
</compile_context>

<pallas_src>
import jax
import jax.numpy as jnp
from jax.experimental import pallas as pl
from jax.experimental.pallas import tpu as pltpu

HID1, HID2, HID3 = 364, 364, 182
LANE = 128
SUBLANE = 8
MAX_BATCH_TILE = 256  # 256-row tile fills a full v6e/v7x MXU pass; 2x128 on v5e


def _round_up(n, m):
    return ((n + m - 1) // m) * m


def _pad2(a, rows, cols):
    return jnp.pad(a, ((0, rows - a.shape[0]), (0, cols - a.shape[1])))


def qnetwork_kernel(x_ref,
                    w1_ref, b1_ref,
                    w2_ref, b2_ref,
                    w3_ref, b3_ref,
                    w4_ref, b4_ref,
                    out_ref):
    """Whole forward pass for one batch tile; all (padded, bf16) weights resident in VMEM.

    Matmuls run with bf16 operands + f32 accumulation on the MXU; bias add and
    ReLU run in f32 on the VPU.
    """
    h = jnp.dot(x_ref[...], w1_ref[...],
                preferred_element_type=jnp.float32) + b1_ref[...]
    h = jnp.maximum(h, 0.0)
    h = jnp.dot(h.astype(jnp.bfloat16), w2_ref[...],
                preferred_element_type=jnp.float32) + b2_ref[...]
    h = jnp.maximum(h, 0.0)
    h = jnp.dot(h.astype(jnp.bfloat16), w3_ref[...],
                preferred_element_type=jnp.float32) + b3_ref[...]
    h = jnp.maximum(h, 0.0)
    out = jnp.dot(h.astype(jnp.bfloat16), w4_ref[...],
                  preferred_element_type=jnp.float32) + b4_ref[...]
    out_ref[...] = out.astype(out_ref.dtype)


@jax.jit
def qnetwork_forward(x, params):
    """x: (B, state_size) float32. params: dict of (in,out) weights and (1,out) biases."""
    B, state_size = x.shape
    action_size = params["w4"].shape[1]

    # Lane-aligned padded dims.
    s_pad = _round_up(state_size, LANE)
    h1p = _round_up(HID1, LANE)   # 384
    h2p = _round_up(HID2, LANE)   # 384
    h3p = _round_up(HID3, LANE)   # 256
    a_pad = _round_up(action_size, LANE)

    # Zero-pad weights/biases so padded lanes stay exactly 0 through bias+ReLU
    # and contribute nothing to the next matmul. Weights cast to bf16 for the
    # MXU; biases stay f32 (bias+ReLU done in f32).
    w1 = _pad2(params["w1"], s_pad, h1p).astype(jnp.bfloat16)
    w2 = _pad2(params["w2"], h1p, h2p).astype(jnp.bfloat16)
    w3 = _pad2(params["w3"], h2p, h3p).astype(jnp.bfloat16)
    w4 = _pad2(params["w4"], h3p, a_pad).astype(jnp.bfloat16)
    b1 = _pad2(params["b1"], 1, h1p)
    b2 = _pad2(params["b2"], 1, h2p)
    b3 = _pad2(params["b3"], 1, h3p)
    b4 = _pad2(params["b4"], 1, a_pad)

    # Batch tiling: big MXU-filling tile for large batches; for small batches
    # a single grid step covering the (sublane-padded) whole batch — no
    # per-step grid overhead and no wasted 128-row padding.
    tile = min(MAX_BATCH_TILE, _round_up(B, SUBLANE))
    b_pad = _round_up(B, tile)
    x_p = _pad2(x, b_pad, s_pad).astype(jnp.bfloat16)
    grid = (b_pad // tile,)

    def full_spec(shape):
        return pl.BlockSpec(shape, lambda i: (0, 0))

    out_p = pl.pallas_call(
        qnetwork_kernel,
        out_shape=jax.ShapeDtypeStruct((b_pad, a_pad), jnp.float32),
        grid_spec=pltpu.PrefetchScalarGridSpec(
            num_scalar_prefetch=0,
            grid=grid,
            in_specs=[
                pl.BlockSpec((tile, s_pad), lambda i: (i, 0)),
                full_spec(w1.shape), full_spec(b1.shape),
                full_spec(w2.shape), full_spec(b2.shape),
                full_spec(w3.shape), full_spec(b3.shape),
                full_spec(w4.shape), full_spec(b4.shape),
            ],
            out_specs=pl.BlockSpec((tile, a_pad), lambda i: (i, 0)),
        ),
        compiler_params=pltpu.CompilerParams(
            dimension_semantics=("parallel",)),
    )(x_p, w1, b1, w2, b2, w3, b3, w4, b4)

    # Strip batch padding and the lane padding of the Q-value output.
    return out_p[:B, :action_size]


def init_params(key, state_size, action_size):
    """Deterministic init mimicking nn.Linear default: U(-1/sqrt(fan_in), 1/sqrt(fan_in)).
    Weights stored pre-transposed as (in, out); biases as (1, out). f32, unpadded."""
    dims = [(state_size, HID1), (HID1, HID2), (HID2, HID3), (HID3, action_size)]
    params = {}
    for idx, (fan_in, fan_out) in enumerate(dims, start=1):
        key, kw, kb = jax.random.split(key, 3)
        bound = 1.0 / jnp.sqrt(jnp.float32(fan_in))
        params[f"w{idx}"] = jax.random.uniform(
            kw, (fan_in, fan_out), jnp.float32, -bound, bound)
        params[f"b{idx}"] = jax.random.uniform(
            kb, (1, fan_out), jnp.float32, -bound, bound)
    return params


def reference_forward_bf16(x, params):
    """Same numeric recipe as the kernel: bf16 matmul operands, f32 accumulation,
    f32 bias + ReLU."""
    def lin(h, w, b):
        return jnp.dot(h.astype(jnp.bfloat16), w.astype(jnp.bfloat16),
                       preferred_element_type=jnp.float32) + b
    h = jnp.maximum(lin(x, params["w1"], params["b1"]), 0.0)
    h = jnp.maximum(lin(h, params["w2"], params["b2"]), 0.0)
    h = jnp.maximum(lin(h, params["w3"], params["b3"]), 0.0)
    return lin(h, params["w4"], params["b4"])


def reference_forward_f32(x, params):
    h = jnp.maximum(x @ params["w1"] + params["b1"], 0.0)
    h = jnp.maximum(h @ params["w2"] + params["b2"], 0.0)
    h = jnp.maximum(h @ params["w3"] + params["b3"], 0.0)
    return h @ params["w4"] + params["b4"]


if __name__ == "__main__":
    key = jax.random.PRNGKey(0)
    state_size, action_size, batch = 8, 4, 2

    k_params, k_x, k_x2 = jax.random.split(key, 3)
    params = init_params(k_params, state_size, action_size)

    # Small-batch (inference-style) path: single grid step, whole batch resident.
    x = jax.random.normal(k_x, (batch, state_size), jnp.float32)
    out = qnetwork_forward(x, params)
    jax.block_until_ready(out)

    assert out.shape == (batch, action_size), out.shape
    ref_bf16 = reference_forward_bf16(x, params)
    assert jnp.allclose(out, ref_bf16, atol=1e-3, rtol=1e-3), "mismatch vs bf16 reference"
    ref_f32 = reference_forward_f32(x, params)
    assert jnp.allclose(out, ref_f32, atol=5e-2, rtol=5e-2), "mismatch vs f32 reference"

    # Larger batch exercises the tiled (grid > 1) path with 256-row tiles.
    batch2 = 300
    x2 = jax.random.normal(k_x2, (batch2, state_size), jnp.float32)
    out2 = qnetwork_forward(x2, params)
    jax.block_until_ready(out2)
    assert out2.shape == (batch2, action_size), out2.shape
    assert jnp.allclose(out2, reference_forward_bf16(x2, params),
                        atol=1e-3, rtol=1e-3), "mismatch vs bf16 reference (tiled path)"

    print("KERNEL_OK")
</pallas_src>

<mosaic_0001>
module attributes {stable_mosaic.version = 11 : i64} {
  func.func @qnetwork_kernel(%arg0: i32, %arg1: memref<8x128xbf16, #tpu.memory_space<vmem>>, %arg2: memref<128x384xbf16, #tpu.memory_space<vmem>>, %arg3: memref<1x384xf32, #tpu.memory_space<vmem>>, %arg4: memref<384x384xbf16, #tpu.memory_space<vmem>>, %arg5: memref<1x384xf32, #tpu.memory_space<vmem>>, %arg6: memref<384x256xbf16, #tpu.memory_space<vmem>>, %arg7: memref<1x256xf32, #tpu.memory_space<vmem>>, %arg8: memref<256x128xbf16, #tpu.memory_space<vmem>>, %arg9: memref<1x128xf32, #tpu.memory_space<vmem>>, %arg10: memref<8x128xf32, #tpu.memory_space<vmem>>) attributes {dimension_semantics = [#tpu.dimension_semantics<parallel>], iteration_bounds = array<i64: 1>, scalar_prefetch = 0 : i64, scratch_operands = 0 : i64, tpu.core_type = #tpu.core_type<tc>, window_params = [{transform_indices = @transform_0, window_bounds = array<i64: 8, 128>}, {pipeline_mode = #tpu.pipeline_mode<synchronous>, transform_indices = @transform_1, window_bounds = array<i64: 128, 384>}, {pipeline_mode = #tpu.pipeline_mode<synchronous>, transform_indices = @transform_2, window_bounds = array<i64: 1, 384>}, {pipeline_mode = #tpu.pipeline_mode<synchronous>, transform_indices = @transform_3, window_bounds = array<i64: 384, 384>}, {pipeline_mode = #tpu.pipeline_mode<synchronous>, transform_indices = @transform_4, window_bounds = array<i64: 1, 384>}, {pipeline_mode = #tpu.pipeline_mode<synchronous>, transform_indices = @transform_5, window_bounds = array<i64: 384, 256>}, {pipeline_mode = #tpu.pipeline_mode<synchronous>, transform_indices = @transform_6, window_bounds = array<i64: 1, 256>}, {pipeline_mode = #tpu.pipeline_mode<synchronous>, transform_indices = @transform_7, window_bounds = array<i64: 256, 128>}, {pipeline_mode = #tpu.pipeline_mode<synchronous>, transform_indices = @transform_8, window_bounds = array<i64: 1, 128>}, {transform_indices = @transform_9, window_bounds = array<i64: 8, 128>}]} {
    %c0 = arith.constant 0 : index
    %c0_0 = arith.constant 0 : index
    %0 = vector.load %arg1[%c0, %c0_0] : memref<8x128xbf16, #tpu.memory_space<vmem>>, vector<8x128xbf16>
    %c0_1 = arith.constant 0 : index
    %c0_2 = arith.constant 0 : index
    %1 = vector.load %arg2[%c0_1, %c0_2] : memref<128x384xbf16, #tpu.memory_space<vmem>>, vector<128x384xbf16>
    %cst = arith.constant dense<0.000000e+00> : vector<8x384xf32>
    %2 = tpu.matmul %0, %1, %cst {dimension_numbers = #tpu.dot_dimension_numbers<[1], [0], [0], [1], [0, 0, 1, 1], [], []>} : vector<8x128xbf16>, vector<128x384xbf16>, vector<8x384xf32> -> vector<8x384xf32>
    %c0_3 = arith.constant 0 : index
    %c0_4 = arith.constant 0 : index
    %3 = vector.load %arg3[%c0_3, %c0_4] : memref<1x384xf32, #tpu.memory_space<vmem>>, vector<1x384xf32>
    %4 = vector.broadcast %3 : vector<1x384xf32> to vector<8x384xf32>
    %5 = arith.addf %2, %4 : vector<8x384xf32>
    %cst_5 = arith.constant 0.000000e+00 : f32
    %6 = vector.broadcast %cst_5 : f32 to vector<8x384xf32>
    %7 = arith.maximumf %5, %6 : vector<8x384xf32>
    %8 = arith.truncf %7 : vector<8x384xf32> to vector<8x384xbf16>
    %c0_6 = arith.constant 0 : index
    %c0_7 = arith.constant 0 : index
    %9 = vector.load %arg4[%c0_6, %c0_7] : memref<384x384xbf16, #tpu.memory_space<vmem>>, vector<384x384xbf16>
    %cst_8 = arith.constant dense<0.000000e+00> : vector<8x384xf32>
    %10 = tpu.matmul %8, %9, %cst_8 {dimension_numbers = #tpu.dot_dimension_numbers<[1], [0], [0], [1], [0, 0, 1, 1], [], []>} : vector<8x384xbf16>, vector<384x384xbf16>, vector<8x384xf32> -> vector<8x384xf32>
    %c0_9 = arith.constant 0 : index
    %c0_10 = arith.constant 0 : index
    %11 = vector.load %arg5[%c0_9, %c0_10] : memref<1x384xf32, #tpu.memory_space<vmem>>, vector<1x384xf32>
    %12 = vector.broadcast %11 : vector<1x384xf32> to vector<8x384xf32>
    %13 = arith.addf %10, %12 : vector<8x384xf32>
    %cst_11 = arith.constant 0.000000e+00 : f32
    %14 = vector.broadcast %cst_11 : f32 to vector<8x384xf32>
    %15 = arith.maximumf %13, %14 : vector<8x384xf32>
    %16 = arith.truncf %15 : vector<8x384xf32> to vector<8x384xbf16>
    %c0_12 = arith.constant 0 : index
    %c0_13 = arith.constant 0 : index
    %17 = vector.load %arg6[%c0_12, %c0_13] : memref<384x256xbf16, #tpu.memory_space<vmem>>, vector<384x256xbf16>
    %cst_14 = arith.constant dense<0.000000e+00> : vector<8x256xf32>
    %18 = tpu.matmul %16, %17, %cst_14 {dimension_numbers = #tpu.dot_dimension_numbers<[1], [0], [0], [1], [0, 0, 1, 1], [], []>} : vector<8x384xbf16>, vector<384x256xbf16>, vector<8x256xf32> -> vector<8x256xf32>
    %c0_15 = arith.constant 0 : index
    %c0_16 = arith.constant 0 : index
    %19 = vector.load %arg7[%c0_15, %c0_16] : memref<1x256xf32, #tpu.memory_space<vmem>>, vector<1x256xf32>
    %20 = vector.broadcast %19 : vector<1x256xf32> to vector<8x256xf32>
    %21 = arith.addf %18, %20 : vector<8x256xf32>
    %cst_17 = arith.constant 0.000000e+00 : f32
    %22 = vector.broadcast %cst_17 : f32 to vector<8x256xf32>
    %23 = arith.maximumf %21, %22 : vector<8x256xf32>
    %24 = arith.truncf %23 : vector<8x256xf32> to vector<8x256xbf16>
    %c0_18 = arith.constant 0 : index
    %c0_19 = arith.constant 0 : index
    %25 = vector.load %arg8[%c0_18, %c0_19] : memref<256x128xbf16, #tpu.memory_space<vmem>>, vector<256x128xbf16>
    %cst_20 = arith.constant dense<0.000000e+00> : vector<8x128xf32>
    %26 = tpu.matmul %24, %25, %cst_20 {dimension_numbers = #tpu.dot_dimension_numbers<[1], [0], [0], [1], [0, 0, 1, 1], [], []>} : vector<8x256xbf16>, vector<256x128xbf16>, vector<8x128xf32> -> vector<8x128xf32>
    %c0_21 = arith.constant 0 : index
    %c0_22 = arith.constant 0 : index
    %27 = vector.load %arg9[%c0_21, %c0_22] : memref<1x128xf32, #tpu.memory_space<vmem>>, vector<1x128xf32>
    %28 = vector.broadcast %27 : vector<1x128xf32> to vector<8x128xf32>
    %29 = arith.addf %26, %28 : vector<8x128xf32>
    %c0_23 = arith.constant 0 : index
    %c0_24 = arith.constant 0 : index
    %30 = vector.load %arg10[%c0_23, %c0_24] : memref<8x128xf32, #tpu.memory_space<vmem>>, vector<8x128xf32>
    tpu.vector_store %arg10[%c0_23, %c0_24], %29 {strides = array<i32>} : memref<8x128xf32, #tpu.memory_space<vmem>>, vector<8x128xf32>,
    return
  }
  func.func @transform_0(%arg0: i32) -> (i32, i32) {
    %c0_i32 = arith.constant 0 : i32
    %c0_i32_0 = arith.constant 0 : i32
    return %arg0, %c0_i32 : i32, i32
  }
  func.func @transform_1(%arg0: i32) -> (i32, i32) {
    %c0_i32 = arith.constant 0 : i32
    %c0_i32_0 = arith.constant 0 : i32
    %c0_i32_1 = arith.constant 0 : i32
    return %c0_i32, %c0_i32_0 : i32, i32
  }
  func.func @transform_2(%arg0: i32) -> (i32, i32) {
    %c0_i32 = arith.constant 0 : i32
    %c0_i32_0 = arith.constant 0 : i32
    %c0_i32_1 = arith.constant 0 : i32
    return %c0_i32, %c0_i32_0 : i32, i32
  }
  func.func @transform_3(%arg0: i32) -> (i32, i32) {
    %c0_i32 = arith.constant 0 : i32
    %c0_i32_0 = arith.constant 0 : i32
    %c0_i32_1 = arith.constant 0 : i32
    return %c0_i32, %c0_i32_0 : i32, i32
  }
  func.func @transform_4(%arg0: i32) -> (i32, i32) {
    %c0_i32 = arith.constant 0 : i32
    %c0_i32_0 = arith.constant 0 : i32
    %c0_i32_1 = arith.constant 0 : i32
    return %c0_i32, %c0_i32_0 : i32, i32
  }
  func.func @transform_5(%arg0: i32) -> (i32, i32) {
    %c0_i32 = arith.constant 0 : i32
    %c0_i32_0 = arith.constant 0 : i32
    %c0_i32_1 = arith.constant 0 : i32
    return %c0_i32, %c0_i32_0 : i32, i32
  }
  func.func @transform_6(%arg0: i32) -> (i32, i32) {
    %c0_i32 = arith.constant 0 : i32
    %c0_i32_0 = arith.constant 0 : i32
    %c0_i32_1 = arith.constant 0 : i32
    return %c0_i32, %c0_i32_0 : i32, i32
  }
  func.func @transform_7(%arg0: i32) -> (i32, i32) {
    %c0_i32 = arith.constant 0 : i32
    %c0_i32_0 = arith.constant 0 : i32
    %c0_i32_1 = arith.constant 0 : i32
    return %c0_i32, %c0_i32_0 : i32, i32
  }
  func.func @transform_8(%arg0: i32) -> (i32, i32) {
    %c0_i32 = arith.constant 0 : i32
    %c0_i32_0 = arith.constant 0 : i32
    %c0_i32_1 = arith.constant 0 : i32
    return %c0_i32, %c0_i32_0 : i32, i32
  }
  func.func @transform_9(%arg0: i32) -> (i32, i32) {
    %c0_i32 = arith.constant 0 : i32
    %c0_i32_0 = arith.constant 0 : i32
    return %arg0, %c0_i32 : i32, i32
  }
}

</mosaic_0001>

<llo_original>
// kernel: qnetwork_forward.1
$region0: #{qnetwork_forward.1}
  #allocation0 [shape = 'u32[]', space=smem, size = 0x4, offset = 0x4, fixed_abs, tag = 'smem constant byte address 0x4 - core index']
  #allocation1 [shape = 'u32[144,128]{1,0:T(1,128)}', space=vmem, size = 0x12000, scoped, tag = 'internal scratch']
  %s0 = inlined_call_operand.vmem [shape: bf16[8,128], index: 0, kind: input, shape index: {}]
  %s1 = inlined_call_operand.vmem [shape: bf16[128,384], index: 1, kind: input, shape index: {}]
  %s2 = inlined_call_operand.vmem [shape: f32[1,384], index: 2, kind: input, shape index: {}]
  %s3 = inlined_call_operand.vmem [shape: bf16[384,384], index: 3, kind: input, shape index: {}]
  %s4 = inlined_call_operand.vmem [shape: f32[1,384], index: 4, kind: input, shape index: {}]
  %s5 = inlined_call_operand.vmem [shape: bf16[384,256], index: 5, kind: input, shape index: {}]
  %s6 = inlined_call_operand.vmem [shape: f32[1,256], index: 6, kind: input, shape index: {}]
  %s7 = inlined_call_operand.vmem [shape: bf16[256,128], index: 7, kind: input, shape index: {}]
  %s8 = inlined_call_operand.vmem [shape: f32[1,128], index: 8, kind: input, shape index: {}]
  %s9 = inlined_call_operand.vmem [shape: f32[8,128], index: 9, kind: output, shape index: {}]
  %s10 = sld [smem:[#allocation0]]
  $region46: #{qnetwork_forward.1} parent=0
    _
  %s12 = ssub.s32 1, %s10
  %s13 = scalar_select 0, %s12, %s10
  // Predicated region
  $region2: #{qnetwork_forward.1} parent=0 // pred_check
    _
  $region3: #{qnetwork_forward.1} parent=0 // pred_check_branch
    %15 = sbr.rel (0) target = $region5
  $region4: #{qnetwork_forward.1} parent=0 // pred_region
    _
  $region5: #{qnetwork_forward.1} parent=0 // pred_fallthru
    _
  // Predicated region
  $region6: #{qnetwork_forward.1} parent=0 // pred_check
    _
  $region7: #{qnetwork_forward.1} parent=0 // pred_check_branch
    %17 = sbr.rel (0) target = $region9
  $region8: #{qnetwork_forward.1} parent=0 // pred_region
    _
  $region9: #{qnetwork_forward.1} parent=0 // pred_fallthru
    _
  // Predicated region
  $region10: #{qnetwork_forward.1} parent=0 // pred_check
    _
  $region11: #{qnetwork_forward.1} parent=0 // pred_check_branch
    %19 = sbr.rel (0) target = $region13
  $region12: #{qnetwork_forward.1} parent=0 // pred_region
    _
  $region13: #{qnetwork_forward.1} parent=0 // pred_fallthru
    _
  // Predicated region
  $region14: #{qnetwork_forward.1} parent=0 // pred_check
    _
  $region15: #{qnetwork_forward.1} parent=0 // pred_check_branch
    %21 = sbr.rel (0) target = $region17
  $region16: #{qnetwork_forward.1} parent=0 // pred_region
    _
  $region17: #{qnetwork_forward.1} parent=0 // pred_fallthru
    _
  // Predicated region
  $region18: #{qnetwork_forward.1} parent=0 // pred_check
    _
  $region19: #{qnetwork_forward.1} parent=0 // pred_check_branch
    %23 = sbr.rel (0) target = $region21
  $region20: #{qnetwork_forward.1} parent=0 // pred_region
    _
  $region21: #{qnetwork_forward.1} parent=0 // pred_fallthru
    _
  // Predicated region
  $region22: #{qnetwork_forward.1} parent=0 // pred_check
    _
  $region23: #{qnetwork_forward.1} parent=0 // pred_check_branch
    %25 = sbr.rel (0) target = $region25
  $region24: #{qnetwork_forward.1} parent=0 // pred_region
    _
  $region25: #{qnetwork_forward.1} parent=0 // pred_fallthru
    _
  // Predicated region
  $region26: #{qnetwork_forward.1} parent=0 // pred_check
    _
  $region27: #{qnetwork_forward.1} parent=0 // pred_check_branch
    %27 = sbr.rel (0) target = $region29
  $region28: #{qnetwork_forward.1} parent=0 // pred_region
    _
  $region29: #{qnetwork_forward.1} parent=0 // pred_fallthru
    _
  // Predicated region
  $region30: #{qnetwork_forward.1} parent=0 // pred_check
    _
  $region31: #{qnetwork_forward.1} parent=0 // pred_check_branch
    %29 = sbr.rel (0) target = $region33
  $region32: #{qnetwork_forward.1} parent=0 // pred_region
    _
  $region33: #{qnetwork_forward.1} parent=0 // pred_fallthru
    _
  // Predicated region
  $region34: #{qnetwork_forward.1} parent=0 // pred_check
    _
  $region35: #{qnetwork_forward.1} parent=0 // pred_check_branch
    %31 = sbr.rel (0) target = $region37
  $region36: #{qnetwork_forward.1} parent=0 // pred_region
    _
  $region37: #{qnetwork_forward.1} parent=0 // pred_fallthru
    _
  %v33 = vld [vmem:[%s0] sm:$0xf]
  %v34 = vld [vmem:[%s1] sm:$0xff]
  %v35 = vld [vmem:[%s1 + $0x8] sm:$0xf]
  %v36 = vld [vmem:[%s1 + $0xc] sm:$0xff]
  %v37 = vld [vmem:[%s1 + $0x14] sm:$0xf]
  %v38 = vld [vmem:[%s1 + $0x18] sm:$0xff]
  %v39 = vld [vmem:[%s1 + $0x20] sm:$0xf]
  %v40 = vld [vmem:[%s1 + $0x24] sm:$0xff]
  %v41 = vld [vmem:[%s1 + $0x2c] sm:$0xf]
  %v42 = vld [vmem:[%s1 + $0x30] sm:$0xff]
  %v43 = vld [vmem:[%s1 + $0x38] sm:$0xf]
  %v44 = vld [vmem:[%s1 + $0x3c] sm:$0xff]
  %v45 = vld [vmem:[%s1 + $0x44] sm:$0xf]
  %v46 = vld [vmem:[%s1 + $0x48] sm:$0xff]
  %v47 = vld [vmem:[%s1 + $0x50] sm:$0xf]
  %v48 = vld [vmem:[%s1 + $0x54] sm:$0xff]
  %v49 = vld [vmem:[%s1 + $0x5c] sm:$0xf]
  %v50 = vld [vmem:[%s1 + $0x60] sm:$0xff]
  %v51 = vld [vmem:[%s1 + $0x68] sm:$0xf]
  %v52 = vld [vmem:[%s1 + $0x6c] sm:$0xff]
  %v53 = vld [vmem:[%s1 + $0x74] sm:$0xf]
  %v54 = vld [vmem:[%s1 + $0x78] sm:$0xff]
  %v55 = vld [vmem:[%s1 + $0x80] sm:$0xf]
  %v56 = vld [vmem:[%s1 + $0x84] sm:$0xff]
  %v57 = vld [vmem:[%s1 + $0x8c] sm:$0xf]
  %v58 = vld [vmem:[%s1 + $0x90] sm:$0xff]
  %v59 = vld [vmem:[%s1 + $0x98] sm:$0xf]
  %v60 = vld [vmem:[%s1 + $0x9c] sm:$0xff]
  %v61 = vld [vmem:[%s1 + $0xa4] sm:$0xf]
  %v62 = vld [vmem:[%s1 + $0xa8] sm:$0xff]
  %v63 = vld [vmem:[%s1 + $0xb0] sm:$0xf]
  %v64 = vld [vmem:[%s1 + $0xb4] sm:$0xff]
  %v65 = vld [vmem:[%s1 + $0xbc] sm:$0xf]
  %v66 = vld [vmem:[%s2] sm:$0x7]
  %v68 = vlaneseq
  %v69 = vshrl.u32 %v68, 7
  %v70 = vsub.s32 0, %v69
  %v71 = vrot.slane %v66, %v70
  %v72 = vlaneseq
  %v73 = vshrl.u32 %v72, 7
  %v74 = vsub.s32 1, %v73
  %v75 = vrot.slane %v66, %v74
  %v76 = vlaneseq
  %v77 = vshrl.u32 %v76, 7
  %v78 = vsub.s32 2, %v77
  %v79 = vrot.slane %v66, %v78
  %v115 = vunpack.c.l.b16 %v34
  %v116 = vunpack.c.h.b16 %v34
  %v117 = vunpack.c.l.b16 %v35
  %v118 = vunpack.c.l.b16 %v36
  %v119 = vunpack.c.h.b16 %v36
  %v120 = vunpack.c.l.b16 %v37
  %v121 = vunpack.c.l.b16 %v38
  %v122 = vunpack.c.h.b16 %v38
  %v123 = vunpack.c.l.b16 %v39
  %v124 = vunpack.c.l.b16 %v40
  %v125 = vunpack.c.h.b16 %v40
  %v126 = vunpack.c.l.b16 %v41
  %v127 = vunpack.c.l.b16 %v42
  %v128 = vunpack.c.h.b16 %v42
  %v129 = vunpack.c.l.b16 %v43
  %v130 = vunpack.c.l.b16 %v44
  %v131 = vunpack.c.h.b16 %v44
  %v132 = vunpack.c.l.b16 %v45
  %v133 = vunpack.c.l.b16 %v46
  %v134 = vunpack.c.h.b16 %v46
  %v135 = vunpack.c.l.b16 %v47
  %v136 = vunpack.c.l.b16 %v48
  %v137 = vunpack.c.h.b16 %v48
  %v138 = vunpack.c.l.b16 %v49
  %v139 = vunpack.c.l.b16 %v50
  %v140 = vunpack.c.h.b16 %v50
  %v141 = vunpack.c.l.b16 %v51
  %v142 = vunpack.c.l.b16 %v52
  %v143 = vunpack.c.h.b16 %v52
  %v144 = vunpack.c.l.b16 %v53
  %v145 = vunpack.c.l.b16 %v54
  %v146 = vunpack.c.h.b16 %v54
  %v147 = vunpack.c.l.b16 %v55
  %v148 = vunpack.c.l.b16 %v56
  %v149 = vunpack.c.h.b16 %v56
  %v150 = vunpack.c.l.b16 %v57
  %v151 = vunpack.c.l.b16 %v58
  %v152 = vunpack.c.h.b16 %v58
  %v153 = vunpack.c.l.b16 %v59
  %v154 = vunpack.c.l.b16 %v60
  %v155 = vunpack.c.h.b16 %v60
  %v156 = vunpack.c.l.b16 %v61
  %v157 = vunpack.c.l.b16 %v62
  %v158 = vunpack.c.h.b16 %v62
  %v159 = vunpack.c.l.b16 %v63
  %v160 = vunpack.c.l.b16 %v64
  %v161 = vunpack.c.h.b16 %v64
  %v162 = vunpack.c.l.b16 %v65
  %v163 = vpack.c.b16 %v118, %v115
  %v164 = vpack.c.b16 %v119, %v116
  %v165 = vpack.c.b16 %v120, %v117
  %v166 = vpack.c.b16 %v124, %v121
  %v167 = vpack.c.b16 %v125, %v122
  %v168 = vpack.c.b16 %v126, %v123
  %v169 = vpack.c.b16 %v130, %v127
  %v170 = vpack.c.b16 %v131, %v128
  %v171 = vpack.c.b16 %v132, %v129
  %v172 = vpack.c.b16 %v136, %v133
  %v173 = vpack.c.b16 %v137, %v134
  %v174 = vpack.c.b16 %v138, %v135
  %v175 = vpack.c.b16 %v142, %v139
  %v176 = vpack.c.b16 %v143, %v140
  %v177 = vpack.c.b16 %v144, %v141
  %v178 = vpack.c.b16 %v148, %v145
  %v179 = vpack.c.b16 %v149, %v146
  %v180 = vpack.c.b16 %v150, %v147
  %v181 = vpack.c.b16 %v154, %v151
  %v182 = vpack.c.b16 %v155, %v152
  %v183 = vpack.c.b16 %v156, %v153
  %v184 = vpack.c.b16 %v160, %v157
  %v185 = vpack.c.b16 %v161, %v158
  %v186 = vpack.c.b16 %v162, %v159
  %211 = vmatprep.subr.bf16.mxu0 %v164
  %212 = vmatpush1.bf16.msra.mxu0 %v163
  %213 = vmatprep.subr.bf16.mxu0 %v167
  %214 = vmatpush1.bf16.msra.mxu0 %v166
  %215 = vmatprep.subr.bf16.mxu0 %v170
  %216 = vmatpush1.bf16.msra.mxu0 %v169
  %217 = vmatprep.subr.bf16.mxu0 %v173
  %218 = vmatpush1.bf16.msra.mxu0 %v172
  %219 = vmatprep.subr.bf16.mxu0 %v176
  %220 = vmatpush1.bf16.msra.mxu0 %v175
  %221 = vmatprep.subr.bf16.mxu0 %v179
  %222 = vmatpush1.bf16.msra.mxu0 %v178
  %223 = vmatprep.subr.bf16.mxu0 %v182
  %224 = vmatpush1.bf16.msra.mxu0 %v181
  %225 = vmatprep.subr.bf16.mxu0 %v185
  %226 = vmatpush1.bf16.msra.mxu0 %v184
  %227 = vmatprep.subr.bf16.mxu0 0
  %228 = vmatpush1.bf16.msra.mxu0 0
  %229 = vmatprep.subr.bf16.mxu0 0
  %230 = vmatpush1.bf16.msra.mxu0 0
  %231 = vmatprep.subr.bf16.mxu0 0
  %232 = vmatpush1.bf16.msra.mxu0 0
  %233 = vmatprep.subr.bf16.mxu0 0
  %234 = vmatpush1.bf16.msra.mxu0 0
  %235 = vmatprep.subr.bf16.mxu0 0
  %236 = vmatpush1.bf16.msra.mxu0 0
  %237 = vmatprep.subr.bf16.mxu0 0
  %238 = vmatpush1.bf16.msra.mxu0 0
  %239 = vmatprep.subr.bf16.mxu0 0
  %240 = vmatpush1.bf16.msra.mxu0 0
  %241 = vmatprep.subr.bf16.mxu0 0
  %242 = vmatpush1.bf16.msra.mxu0 0
  %243 = vmatprep.mubr.bf16.mxu0 0
  %244 = vmatmul.mubr.bf16.gmra.mrb[0].mxu0 %v33
  %v245 = vpop.f32.mrb[0].mxu0
  %v246 = vadd.f32 %v71, %v245
  %v247 = vpop.f32.mrb[0].mxu0
  %v248 = vadd.f32 %v75, %v247
  %v249 = vpop.f32.mrb[0].mxu0
  %v250 = vpop.f32.mrb[0].mxu0
  %251 = vdwg.mxu0
  %252 = vmatprep.subr.bf16.mxu0 0
  %253 = vmatpush1.bf16.msra.mxu0 %v165
  %254 = vmatprep.subr.bf16.mxu0 0
  %255 = vmatpush1.bf16.msra.mxu0 %v168
  %256 = vmatprep.subr.bf16.mxu0 0
  %257 = vmatpush1.bf16.msra.mxu0 %v171
  %258 = vmatprep.subr.bf16.mxu0 0
  %259 = vmatpush1.bf16.msra.mxu0 %v174
  %260 = vmatprep.subr.bf16.mxu0 0
  %261 = vmatpush1.bf16.msra.mxu0 %v177
  %262 = vmatprep.subr.bf16.mxu0 0
  %263 = vmatpush1.bf16.msra.mxu0 %v180
  %264 = vmatprep.subr.bf16.mxu0 0
  %265 = vmatpush1.bf16.msra.mxu0 %v183
  %266 = vmatprep.subr.bf16.mxu0 0
  %267 = vmatpush1.bf16.msra.mxu0 %v186
  %268 = vmatprep.subr.bf16.mxu0 0
  %269 = vmatpush1.bf16.msra.mxu0 0
  %270 = vmatprep.subr.bf16.mxu0 0
  %271 = vmatpush1.bf16.msra.mxu0 0
  %272 = vmatprep.subr.bf16.mxu0 0
  %273 = vmatpush1.bf16.msra.mxu0 0
  %274 = vmatprep.subr.bf16.mxu0 0
  %275 = vmatpush1.bf16.msra.mxu0 0
  %276 = vmatprep.subr.bf16.mxu0 0
  %277 = vmatpush1.bf16.msra.mxu0 0
  %278 = vmatprep.subr.bf16.mxu0 0
  %279 = vmatpush1.bf16.msra.mxu0 0
  %280 = vmatprep.subr.bf16.mxu0 0
  %281 = vmatpush1.bf16.msra.mxu0 0
  %282 = vmatprep.subr.bf16.mxu0 0
  %283 = vmatpush1.bf16.msra.mxu0 0
  %284 = vmatprep.mubr.bf16.mxu0 0
  %285 = vmatmul.mubr.bf16.gmra.mrb[0].mxu0 %v33
  %v286 = vpop.f32.mrb[0].mxu0
  %v287 = vadd.f32 %v79, %v286
  %v288 = vpop.f32.mrb[0].mxu0
  %v289 = vpop.f32.mrb[0].mxu0
  %v290 = vpop.f32.mrb[0].mxu0
  %291 = vdwg.mxu0
  %v292 = vmax.f32 %v246, 0.0
  %v293 = vmax.f32 %v248, 0.0
  %v294 = vmax.f32 %v287, 0.0
  %v295 = vpack.c.bf16 %v292, %v292
  %v296 = vpack.c.bf16 %v293, %v293
  %v297 = vpack.c.bf16 %v294, %v294
  %v298 = vld [vmem:[%s3] sm:$0xff]
  %v299 = vld [vmem:[%s3 + $0x8] sm:$0xf]
  %v300 = vld [vmem:[%s3 + $0xc] sm:$0xff]
  %v301 = vld [vmem:[%s3 + $0x14] sm:$0xf]
  %v302 = vld [vmem:[%s3 + $0x18] sm:$0xff]
  %v303 = vld [vmem:[%s3 + $0x20] sm:$0xf]
  %v304 = vld [vmem:[%s3 + $0x24] sm:$0xff]
  %v305 = vld [vmem:[%s3 + $0x2c] sm:$0xf]
  %v306 = vld [vmem:[%s3 + $0x30] sm:$0xff]
  %v307 = vld [vmem:[%s3 + $0x38] sm:$0xf]
  %v308 = vld [vmem:[%s3 + $0x3c] sm:$0xff]
  %v309 = vld [vmem:[%s3 + $0x44] sm:$0xf]
  %v310 = vld [vmem:[%s3 + $0x48] sm:$0xff]
  %v311 = vld [vmem:[%s3 + $0x50] sm:$0xf]
  %v312 = vld [vmem:[%s3 + $0x54] sm:$0xff]
  %v313 = vld [vmem:[%s3 + $0x5c] sm:$0xf]
  %v314 = vld [vmem:[%s3 + $0x60] sm:$0xff]
  %v315 = vld [vmem:[%s3 + $0x68] sm:$0xf]
  %v316 = vld [vmem:[%s3 + $0x6c] sm:$0xff]
  %v317 = vld [vmem:[%s3 + $0x74] sm:$0xf]
  %v318 = vld [vmem:[%s3 + $0x78] sm:$0xff]
  %v319 = vld [vmem:[%s3 + $0x80] sm:$0xf]
  %v320 = vld [vmem:[%s3 + $0x84] sm:$0xff]
  %v321 = vld [vmem:[%s3 + $0x8c] sm:$0xf]
  %v322 = vld [vmem:[%s3 + $0x90] sm:$0xff]
  %v323 = vld [vmem:[%s3 + $0x98] sm:$0xf]
  %v324 = vld [vmem:[%s3 + $0x9c] sm:$0xff]
  %v325 = vld [vmem:[%s3 + $0xa4] sm:$0xf]
  %v326 = vld [vmem:[%s3 + $0xa8] sm:$0xff]
  %v327 = vld [vmem:[%s3 + $0xb0] sm:$0xf]
  %v328 = vld [vmem:[%s3 + $0xb4] sm:$0xff]
  %v329 = vld [vmem:[%s3 + $0xbc] sm:$0xf]
  %v330 = vld [vmem:[%s3 + $0xc0] sm:$0xff]
  %v331 = vld [vmem:[%s3 + $0xc8] sm:$0xf]
  %v332 = vld [vmem:[%s3 + $0xcc] sm:$0xff]
  %v333 = vld [vmem:[%s3 + $0xd4] sm:$0xf]
  %v334 = vld [vmem:[%s3 + $0xd8] sm:$0xff]
  %v335 = vld [vmem:[%s3 + $0xe0] sm:$0xf]
  %v336 = vld [vmem:[%s3 + $0xe4] sm:$0xff]
  %v337 = vld [vmem:[%s3 + $0xec] sm:$0xf]
  %v338 = vld [vmem:[%s3 + $0xf0] sm:$0xff]
  %v339 = vld [vmem:[%s3 + $0xf8] sm:$0xf]
  %v340 = vld [vmem:[%s3 + $0xfc] sm:$0xff]
  %v341 = vld [vmem:[%s3 + $0x104] sm:$0xf]
  %v342 = vld [vmem:[%s3 + $0x108] sm:$0xff]
  %v343 = vld [vmem:[%s3 + $0x110] sm:$0xf]
  %v344 = vld [vmem:[%s3 + $0x114] sm:$0xff]
  %v345 = vld [vmem:[%s3 + $0x11c] sm:$0xf]
  %v346 = vld [vmem:[%s3 + $0x120] sm:$0xff]
  %v347 = vld [vmem:[%s3 + $0x128] sm:$0xf]
  %v348 = vld [vmem:[%s3 + $0x12c] sm:$0xff]
  %v349 = vld [vmem:[%s3 + $0x134] sm:$0xf]
  %v350 = vld [vmem:[%s3 + $0x138] sm:$0xff]
  %v351 = vld [vmem:[%s3 + $0x140] sm:$0xf]
  %v352 = vld [vmem:[%s3 + $0x144] sm:$0xff]
  %v353 = vld [vmem:[%s3 + $0x14c] sm:$0xf]
  %v354 = vld [vmem:[%s3 + $0x150] sm:$0xff]
  %v355 = vld [vmem:[%s3 + $0x158] sm:$0xf]
  %v356 = vld [vmem:[%s3 + $0x15c] sm:$0xff]
  %v357 = vld [vmem:[%s3 + $0x164] sm:$0xf]
  %v358 = vld [vmem:[%s3 + $0x168] sm:$0xff]
  %v359 = vld [vmem:[%s3 + $0x170] sm:$0xf]
  %v360 = vld [vmem:[%s3 + $0x174] sm:$0xff]
  %v361 = vld [vmem:[%s3 + $0x17c] sm:$0xf]
  %v362 = vld [vmem:[%s3 + $0x180] sm:$0xff]
  %v363 = vld [vmem:[%s3 + $0x188] sm:$0xf]
  %v364 = vld [vmem:[%s3 + $0x18c] sm:$0xff]
  %v365 = vld [vmem:[%s3 + $0x194] sm:$0xf]
  %v366 = vld [vmem:[%s3 + $0x198] sm:$0xff]
  %v367 = vld [vmem:[%s3 + $0x1a0] sm:$0xf]
  %v368 = vld [vmem:[%s3 + $0x1a4] sm:$0xff]
  %v369 = vld [vmem:[%s3 + $0x1ac] sm:$0xf]
  %v370 = vld [vmem:[%s3 + $0x1b0] sm:$0xff]
  %v371 = vld [vmem:[%s3 + $0x1b8] sm:$0xf]
  %v372 = vld [vmem:[%s3 + $0x1bc] sm:$0xff]
  %v373 = vld [vmem:[%s3 + $0x1c4] sm:$0xf]
  %v374 = vld [vmem:[%s3 + $0x1c8] sm:$0xff]
  %v375 = vld [vmem:[%s3 + $0x1d0] sm:$0xf]
  %v376 = vld [vmem:[%s3 + $0x1d4] sm:$0xff]
  %v377 = vld [vmem:[%s3 + $0x1dc] sm:$0xf]
  %v378 = vld [vmem:[%s3 + $0x1e0] sm:$0xff]
  %v379 = vld [vmem:[%s3 + $0x1e8] sm:$0xf]
  %v380 = vld [vmem:[%s3 + $0x1ec] sm:$0xff]
  %v381 = vld [vmem:[%s3 + $0x1f4] sm:$0xf]
  %v382 = vld [vmem:[%s3 + $0x1f8] sm:$0xff]
  %v383 = vld [vmem:[%s3 + $0x200] sm:$0xf]
  %v384 = vld [vmem:[%s3 + $0x204] sm:$0xff]
  %v385 = vld [vmem:[%s3 + $0x20c] sm:$0xf]
  %v386 = vld [vmem:[%s3 + $0x210] sm:$0xff]
  %v387 = vld [vmem:[%s3 + $0x218] sm:$0xf]
  %v388 = vld [vmem:[%s3 + $0x21c] sm:$0xff]
  %v389 = vld [vmem:[%s3 + $0x224] sm:$0xf]
  %v390 = vld [vmem:[%s3 + $0x228] sm:$0xff]
  %v391 = vld [vmem:[%s3 + $0x230] sm:$0xf]
  %v392 = vld [vmem:[%s3 + $0x234] sm:$0xff]
  %v393 = vld [vmem:[%s3 + $0x23c] sm:$0xf]
  %v394 = vld [vmem:[%s4] sm:$0x7]
  %v396 = vlaneseq
  %v397 = vshrl.u32 %v396, 7
  %v398 = vsub.s32 0, %v397
  %v399 = vrot.slane %v394, %v398
  %v400 = vlaneseq
  %v401 = vshrl.u32 %v400, 7
  %v402 = vsub.s32 1, %v401
  %v403 = vrot.slane %v394, %v402
  %v404 = vlaneseq
  %v405 = vshrl.u32 %v404, 7
  %v406 = vsub.s32 2, %v405
  %v407 = vrot.slane %v394, %v406
  %v507 = vunpack.c.l.b16 %v298
  %v508 = vunpack.c.h.b16 %v298
  %v509 = vunpack.c.l.b16 %v299
  %v510 = vunpack.c.l.b16 %v300
  %v511 = vunpack.c.h.b16 %v300
  %v512 = vunpack.c.l.b16 %v301
  %v513 = vunpack.c.l.b16 %v302
  %v514 = vunpack.c.h.b16 %v302
  %v515 = vunpack.c.l.b16 %v303
  %v516 = vunpack.c.l.b16 %v304
  %v517 = vunpack.c.h.b16 %v304
  %v518 = vunpack.c.l.b16 %v305
  %v519 = vunpack.c.l.b16 %v306
  %v520 = vunpack.c.h.b16 %v306
  %v521 = vunpack.c.l.b16 %v307
  %v522 = vunpack.c.l.b16 %v308
  %v523 = vunpack.c.h.b16 %v308
  %v524 = vunpack.c.l.b16 %v309
  %v525 = vunpack.c.l.b16 %v310
  %v526 = vunpack.c.h.b16 %v310
  %v527 = vunpack.c.l.b16 %v311
  %v528 = vunpack.c.l.b16 %v312
  %v529 = vunpack.c.h.b16 %v312
  %v530 = vunpack.c.l.b16 %v313
  %v531 = vunpack.c.l.b16 %v314
  %v532 = vunpack.c.h.b16 %v314
  %v533 = vunpack.c.l.b16 %v315
  %v534 = vunpack.c.l.b16 %v316
  %v535 = vunpack.c.h.b16 %v316
  %v536 = vunpack.c.l.b16 %v317
  %v537 = vunpack.c.l.b16 %v318
  %v538 = vunpack.c.h.b16 %v318
  %v539 = vunpack.c.l.b16 %v319
  %v540 = vunpack.c.l.b16 %v320
  %v541 = vunpack.c.h.b16 %v320
  %v542 = vunpack.c.l.b16 %v321
  %v543 = vunpack.c.l.b16 %v322
  %v544 = vunpack.c.h.b16 %v322
  %v545 = vunpack.c.l.b16 %v323
  %v546 = vunpack.c.l.b16 %v324
  %v547 = vunpack.c.h.b16 %v324
  %v548 = vunpack.c.l.b16 %v325
  %v549 = vunpack.c.l.b16 %v326
  %v550 = vunpack.c.h.b16 %v326
  %v551 = vunpack.c.l.b16 %v327
  %v552 = vunpack.c.l.b16 %v328
  %v553 = vunpack.c.h.b16 %v328
  %v554 = vunpack.c.l.b16 %v329
  %v555 = vunpack.c.l.b16 %v330
  %v556 = vunpack.c.h.b16 %v330
  %v557 = vunpack.c.l.b16 %v331
  %v558 = vunpack.c.l.b16 %v332
  %v559 = vunpack.c.h.b16 %v332
  %v560 = vunpack.c.l.b16 %v333
  %v561 = vunpack.c.l.b16 %v334
  %v562 = vunpack.c.h.b16 %v334
  %v563 = vunpack.c.l.b16 %v335
  %v564 = vunpack.c.l.b16 %v336
  %v565 = vunpack.c.h.b16 %v336
  %v566 = vunpack.c.l.b16 %v337
  %v567 = vunpack.c.l.b16 %v338
  %v568 = vunpack.c.h.b16 %v338
  %v569 = vunpack.c.l.b16 %v339
  %v570 = vunpack.c.l.b16 %v340
  %v571 = vunpack.c.h.b16 %v340
  %v572 = vunpack.c.l.b16 %v341
  %v573 = vunpack.c.l.b16 %v342
  %v574 = vunpack.c.h.b16 %v342
  %v575 = vunpack.c.l.b16 %v343
  %v576 = vunpack.c.l.b16 %v344
  %v577 = vunpack.c.h.b16 %v344
  %v578 = vunpack.c.l.b16 %v345
  %v579 = vunpack.c.l.b16 %v346
  %v580 = vunpack.c.h.b16 %v346
  %v581 = vunpack.c.l.b16 %v347
  %v582 = vunpack.c.l.b16 %v348
  %v583 = vunpack.c.h.b16 %v348
  %v584 = vunpack.c.l.b16 %v349
  %v585 = vunpack.c.l.b16 %v350
  %v586 = vunpack.c.h.b16 %v350
  %v587 = vunpack.c.l.b16 %v351
  %v588 = vunpack.c.l.b16 %v352
  %v589 = vunpack.c.h.b16 %v352
  %v590 = vunpack.c.l.b16 %v353
  %v591 = vunpack.c.l.b16 %v354
  %v592 = vunpack.c.h.b16 %v354
  %v593 = vunpack.c.l.b16 %v355
  %v594 = vunpack.c.l.b16 %v356
  %v595 = vunpack.c.h.b16 %v356
  %v596 = vunpack.c.l.b16 %v357
  %v597 = vunpack.c.l.b16 %v358
  %v598 = vunpack.c.h.b16 %v358
  %v599 = vunpack.c.l.b16 %v359
  %v600 = vunpack.c.l.b16 %v360
  %v601 = vunpack.c.h.b16 %v360
  %v602 = vunpack.c.l.b16 %v361
  %v603 = vunpack.c.l.b16 %v362
  %v604 = vunpack.c.h.b16 %v362
  %v605 = vunpack.c.l.b16 %v363
  %v606 = vunpack.c.l.b16 %v364
  %v607 = vunpack.c.h.b16 %v364
  %v608 = vunpack.c.l.b16 %v365
  %v609 = vunpack.c.l.b16 %v366
  %v610 = vunpack.c.h.b16 %v366
  %v611 = vunpack.c.l.b16 %v367
  %v612 = vunpack.c.l.b16 %v368
  %v613 = vunpack.c.h.b16 %v368
  %v614 = vunpack.c.l.b16 %v369
  %v615 = vunpack.c.l.b16 %v370
  %v616 = vunpack.c.h.b16 %v370
  %v617 = vunpack.c.l.b16 %v371
  %v618 = vunpack.c.l.b16 %v372
  %v619 = vunpack.c.h.b16 %v372
  %v620 = vunpack.c.l.b16 %v373
  %v621 = vunpack.c.l.b16 %v374
  %v622 = vunpack.c.h.b16 %v374
  %v623 = vunpack.c.l.b16 %v375
  %v624 = vunpack.c.l.b16 %v376
  %v625 = vunpack.c.h.b16 %v376
  %v626 = vunpack.c.l.b16 %v377
  %v627 = vunpack.c.l.b16 %v378
  %v628 = vunpack.c.h.b16 %v378
  %v629 = vunpack.c.l.b16 %v379
  %v630 = vunpack.c.l.b16 %v380
  %v631 = vunpack.c.h.b16 %v380
  %v632 = vunpack.c.l.b16 %v381
  %v633 = vunpack.c.l.b16 %v382
  %v634 = vunpack.c.h.b16 %v382
  %v635 = vunpack.c.l.b16 %v383
  %v636 = vunpack.c.l.b16 %v384
  %v637 = vunpack.c.h.b16 %v384
  %v638 = vunpack.c.l.b16 %v385
  %v639 = vunpack.c.l.b16 %v386
  %v640 = vunpack.c.h.b16 %v386
  %v641 = vunpack.c.l.b16 %v387
  %v642 = vunpack.c.l.b16 %v388
  %v643 = vunpack.c.h.b16 %v388
  %v644 = vunpack.c.l.b16 %v389
  %v645 = vunpack.c.l.b16 %v390
  %v646 = vunpack.c.h.b16 %v390
  %v647 = vunpack.c.l.b16 %v391
  %v648 = vunpack.c.l.b16 %v392
  %v649 = vunpack.c.h.b16 %v392
  %v650 = vunpack.c.l.b16 %v393
  %v651 = vpack.c.b16 %v510, %v507
  %v652 = vpack.c.b16 %v511, %v508
  %v653 = vpack.c.b16 %v512, %v509
  %v654 = vpack.c.b16 %v516, %v513
  %v655 = vpack.c.b16 %v517, %v514
  %v656 = vpack.c.b16 %v518, %v515
  %v657 = vpack.c.b16 %v522, %v519
  %v658 = vpack.c.b16 %v523, %v520
  %v659 = vpack.c.b16 %v524, %v521
  %v660 = vpack.c.b16 %v528, %v525
  %v661 = vpack.c.b16 %v529, %v526
  %v662 = vpack.c.b16 %v530, %v527
  %v663 = vpack.c.b16 %v534, %v531
  %v664 = vpack.c.b16 %v535, %v532
  %v665 = vpack.c.b16 %v536, %v533
  %v666 = vpack.c.b16 %v540, %v537
  %v667 = vpack.c.b16 %v541, %v538
  %v668 = vpack.c.b16 %v542, %v539
  %v669 = vpack.c.b16 %v546, %v543
  %v670 = vpack.c.b16 %v547, %v544
  %v671 = vpack.c.b16 %v548, %v545
  %v672 = vpack.c.b16 %v552, %v549
  %v673 = vpack.c.b16 %v553, %v550
  %v674 = vpack.c.b16 %v554, %v551
  %v675 = vpack.c.b16 %v558, %v555
  %v676 = vpack.c.b16 %v559, %v556
  %v677 = vpack.c.b16 %v560, %v557
  %v678 = vpack.c.b16 %v564, %v561
  %v679 = vpack.c.b16 %v565, %v562
  %v680 = vpack.c.b16 %v566, %v563
  %v681 = vpack.c.b16 %v570, %v567
  %v682 = vpack.c.b16 %v571, %v568
  %v683 = vpack.c.b16 %v572, %v569
  %v684 = vpack.c.b16 %v576, %v573
  %v685 = vpack.c.b16 %v577, %v574
  %v686 = vpack.c.b16 %v578, %v575
  %v687 = vpack.c.b16 %v582, %v579
  %v688 = vpack.c.b16 %v583, %v580
  %v689 = vpack.c.b16 %v584, %v581
  %v690 = vpack.c.b16 %v588, %v585
  %v691 = vpack.c.b16 %v589, %v586
  %v692 = vpack.c.b16 %v590, %v587
  %v693 = vpack.c.b16 %v594, %v591
  %v694 = vpack.c.b16 %v595, %v592
  %v695 = vpack.c.b16 %v596, %v593
  %v696 = vpack.c.b16 %v600, %v597
  %v697 = vpack.c.b16 %v601, %v598
  %v698 = vpack.c.b16 %v602, %v599
  %v699 = vpack.c.b16 %v606, %v603
  %v700 = vpack.c.b16 %v607, %v604
  %v701 = vpack.c.b16 %v608, %v605
  %v702 = vpack.c.b16 %v612, %v609
  %v703 = vpack.c.b16 %v613, %v610
  %v704 = vpack.c.b16 %v614, %v611
  %v705 = vpack.c.b16 %v618, %v615
  %v706 = vpack.c.b16 %v619, %v616
  %v707 = vpack.c.b16 %v620, %v617
  %v708 = vpack.c.b16 %v624, %v621
  %v709 = vpack.c.b16 %v625, %v622
  %v710 = vpack.c.b16 %v626, %v623
  %v711 = vpack.c.b16 %v630, %v627
  %v712 = vpack.c.b16 %v631, %v628
  %v713 = vpack.c.b16 %v632, %v629
  %v714 = vpack.c.b16 %v636, %v633
  %v715 = vpack.c.b16 %v637, %v634
  %v716 = vpack.c.b16 %v638, %v635
  %v717 = vpack.c.b16 %v642, %v639
  %v718 = vpack.c.b16 %v643, %v640
  %v719 = vpack.c.b16 %v644, %v641
  %v720 = vpack.c.b16 %v648, %v645
  %v721 = vpack.c.b16 %v649, %v646
  %v722 = vpack.c.b16 %v650, %v647
  %795 = vmatprep.subr.bf16.mxu0 %v652
  %796 = vmatpush1.bf16.msra.mxu0 %v651
  %797 = vmatprep.subr.bf16.mxu0 %v655
  %798 = vmatpush1.bf16.msra.mxu0 %v654
  %799 = vmatprep.subr.bf16.mxu0 %v658
  %800 = vmatpush1.bf16.msra.mxu0 %v657
  %801 = vmatprep.subr.bf16.mxu0 %v661
  %802 = vmatpush1.bf16.msra.mxu0 %v660
  %803 = vmatprep.subr.bf16.mxu0 %v664
  %804 = vmatpush1.bf16.msra.mxu0 %v663
  %805 = vmatprep.subr.bf16.mxu0 %v667
  %806 = vmatpush1.bf16.msra.mxu0 %v666
  %807 = vmatprep.subr.bf16.mxu0 %v670
  %808 = vmatpush1.bf16.msra.mxu0 %v669
  %809 = vmatprep.subr.bf16.mxu0 %v673
  %810 = vmatpush1.bf16.msra.mxu0 %v672
  %811 = vmatprep.subr.bf16.mxu0 %v676
  %812 = vmatpush1.bf16.msra.mxu0 %v675
  %813 = vmatprep.subr.bf16.mxu0 %v679
  %814 = vmatpush1.bf16.msra.mxu0 %v678
  %815 = vmatprep.subr.bf16.mxu0 %v682
  %816 = vmatpush1.bf16.msra.mxu0 %v681
  %817 = vmatprep.subr.bf16.mxu0 %v685
  %818 = vmatpush1.bf16.msra.mxu0 %v684
  %819 = vmatprep.subr.bf16.mxu0 %v688
  %820 = vmatpush1.bf16.msra.mxu0 %v687
  %821 = vmatprep.subr.bf16.mxu0 %v691
  %822 = vmatpush1.bf16.msra.mxu0 %v690
  %823 = vmatprep.subr.bf16.mxu0 %v694
  %824 = vmatpush1.bf16.msra.mxu0 %v693
  %825 = vmatprep.subr.bf16.mxu0 %v697
  %826 = vmatpush1.bf16.msra.mxu0 %v696
  %827 = vmatprep.mubr.bf16.mxu0 %v296
  %828 = vmatmul.mubr.bf16.gmra.mrb[0].mxu0 %v295
  %v829 = vpop.f32.mrb[0].mxu0
  %v830 = vadd.f32 %v399, %v829
  %v831 = vpop.f32.mrb[0].mxu0
  %v832 = vadd.f32 %v403, %v831
  %v833 = vpop.f32.mrb[0].mxu0
  %v834 = vpop.f32.mrb[0].mxu0
  %835 = vdwg.mxu0
  %836 = vmatprep.subr.bf16.mxu0 %v700
  %837 = vmatpush1.bf16.msra.mxu0 %v699
  %838 = vmatprep.subr.bf16.mxu0 %v703
  %839 = vmatpush1.bf16.msra.mxu0 %v702
  %840 = vmatprep.subr.bf16.mxu0 %v706
  %841 = vmatpush1.bf16.msra.mxu0 %v705
  %842 = vmatprep.subr.bf16.mxu0 %v709
  %843 = vmatpush1.bf16.msra.mxu0 %v708
  %844 = vmatprep.subr.bf16.mxu0 %v712
  %845 = vmatpush1.bf16.msra.mxu0 %v711
  %846 = vmatprep.subr.bf16.mxu0 %v715
  %847 = vmatpush1.bf16.msra.mxu0 %v714
  %848 = vmatprep.subr.bf16.mxu0 %v718
  %849 = vmatpush1.bf16.msra.mxu0 %v717
  %850 = vmatprep.subr.bf16.mxu0 %v721
  %851 = vmatpush1.bf16.msra.mxu0 %v720
  %852 = vmatprep.subr.bf16.mxu0 0
  %853 = vmatpush1.bf16.msra.mxu0 0
  %854 = vmatprep.subr.bf16.mxu0 0
  %855 = vmatpush1.bf16.msra.mxu0 0
  %856 = vmatprep.subr.bf16.mxu0 0
  %857 = vmatpush1.bf16.msra.mxu0 0
  %858 = vmatprep.subr.bf16.mxu0 0
  %859 = vmatpush1.bf16.msra.mxu0 0
  %860 = vmatprep.subr.bf16.mxu0 0
  %861 = vmatpush1.bf16.msra.mxu0 0
  %862 = vmatprep.subr.bf16.mxu0 0
  %863 = vmatpush1.bf16.msra.mxu0 0
  %864 = vmatprep.subr.bf16.mxu0 0
  %865 = vmatpush1.bf16.msra.mxu0 0
  %866 = vmatprep.subr.bf16.mxu0 0
  %867 = vmatpush1.bf16.msra.mxu0 0
  %868 = vmatprep.mubr.bf16.mxu0 0
  %869 = vmatmul.mubr.bf16.gmra.mrb[0].mxu0 %v297
  %v870 = vpop.f32.mrb[0].mxu0
  %v871 = vadd.f32 %v830, %v870
  %v872 = vpop.f32.mrb[0].mxu0
  %v873 = vadd.f32 %v832, %v872
  %v874 = vpop.f32.mrb[0].mxu0
  %v875 = vpop.f32.mrb[0].mxu0
  %876 = vdwg.mxu0
  %877 = vmatprep.subr.bf16.mxu0 0
  %878 = vmatpush1.bf16.msra.mxu0 %v653
  %879 = vmatprep.subr.bf16.mxu0 0
  %880 = vmatpush1.bf16.msra.mxu0 %v656
  %881 = vmatprep.subr.bf16.mxu0 0
  %882 = vmatpush1.bf16.msra.mxu0 %v659
  %883 = vmatprep.subr.bf16.mxu0 0
  %884 = vmatpush1.bf16.msra.mxu0 %v662
  %885 = vmatprep.subr.bf16.mxu0 0
  %886 = vmatpush1.bf16.msra.mxu0 %v665
  %887 = vmatprep.subr.bf16.mxu0 0
  %888 = vmatpush1.bf16.msra.mxu0 %v668
  %889 = vmatprep.subr.bf16.mxu0 0
  %890 = vmatpush1.bf16.msra.mxu0 %v671
  %891 = vmatprep.subr.bf16.mxu0 0
  %892 = vmatpush1.bf16.msra.mxu0 %v674
  %893 = vmatprep.subr.bf16.mxu0 0
  %894 = vmatpush1.bf16.msra.mxu0 %v677
  %895 = vmatprep.subr.bf16.mxu0 0
  %896 = vmatpush1.bf16.msra.mxu0 %v680
  %897 = vmatprep.subr.bf16.mxu0 0
  %898 = vmatpush1.bf16.msra.mxu0 %v683
  %899 = vmatprep.subr.bf16.mxu0 0
  %900 = vmatpush1.bf16.msra.mxu0 %v686
  %901 = vmatprep.subr.bf16.mxu0 0
  %902 = vmatpush1.bf16.msra.mxu0 %v689
  %903 = vmatprep.subr.bf16.mxu0 0
  %904 = vmatpush1.bf16.msra.mxu0 %v692
  %905 = vmatprep.subr.bf16.mxu0 0
  %906 = vmatpush1.bf16.msra.mxu0 %v695
  %907 = vmatprep.subr.bf16.mxu0 0
  %908 = vmatpush1.bf16.msra.mxu0 %v698
  %909 = vmatprep.mubr.bf16.mxu0 %v296
  %910 = vmatmul.mubr.bf16.gmra.mrb[0].mxu0 %v295
  %v911 = vpop.f32.mrb[0].mxu0
  %v912 = vadd.f32 %v407, %v911
  %v913 = vpop.f32.mrb[0].mxu0
  %v914 = vpop.f32.mrb[0].mxu0
  %v915 = vpop.f32.mrb[0].mxu0
  %916 = vdwg.mxu0
  %917 = vmatprep.subr.bf16.mxu0 0
  %918 = vmatpush1.bf16.msra.mxu0 %v701
  %919 = vmatprep.subr.bf16.mxu0 0
  %920 = vmatpush1.bf16.msra.mxu0 %v704
  %921 = vmatprep.subr.bf16.mxu0 0
  %922 = vmatpush1.bf16.msra.mxu0 %v707
  %923 = vmatprep.subr.bf16.mxu0 0
  %924 = vmatpush1.bf16.msra.mxu0 %v710
  %925 = vmatprep.subr.bf16.mxu0 0
  %926 = vmatpush1.bf16.msra.mxu0 %v713
  %927 = vmatprep.subr.bf16.mxu0 0
  %928 = vmatpush1.bf16.msra.mxu0 %v716
  %929 = vmatprep.subr.bf16.mxu0 0
  %930 = vmatpush1.bf16.msra.mxu0 %v719
  %931 = vmatprep.subr.bf16.mxu0 0
  %932 = vmatpush1.bf16.msra.mxu0 %v722
  %933 = vmatprep.subr.bf16.mxu0 0
  %934 = vmatpush1.bf16.msra.mxu0 0
  %935 = vmatprep.subr.bf16.mxu0 0
  %936 = vmatpush1.bf16.msra.mxu0 0
  %937 = vmatprep.subr.bf16.mxu0 0
  %938 = vmatpush1.bf16.msra.mxu0 0
  %939 = vmatprep.subr.bf16.mxu0 0
  %940 = vmatpush1.bf16.msra.mxu0 0
  %941 = vmatprep.subr.bf16.mxu0 0
  %942 = vmatpush1.bf16.msra.mxu0 0
  %943 = vmatprep.subr.bf16.mxu0 0
  %944 = vmatpush1.bf16.msra.mxu0 0
  %945 = vmatprep.subr.bf16.mxu0 0
  %946 = vmatpush1.bf16.msra.mxu0 0
  %947 = vmatprep.subr.bf16.mxu0 0
  %948 = vmatpush1.bf16.msra.mxu0 0
  %949 = vmatprep.mubr.bf16.mxu0 0
  %950 = vmatmul.mubr.bf16.gmra.mrb[0].mxu0 %v297
  %v951 = vpop.f32.mrb[0].mxu0
  %v952 = vadd.f32 %v912, %v951
  %v953 = vpop.f32.mrb[0].mxu0
  %v954 = vpop.f32.mrb[0].mxu0
  %v955 = vpop.f32.mrb[0].mxu0
  %956 = vdwg.mxu0
  %v957 = vmax.f32 %v871, 0.0
  %v958 = vmax.f32 %v873, 0.0
  %v959 = vmax.f32 %v952, 0.0
  %v960 = vpack.c.bf16 %v957, %v957
  %v961 = vpack.c.bf16 %v958, %v958
  %v962 = vpack.c.bf16 %v959, %v959
  %v963 = vld [vmem:[%s5] sm:$0xff]
  %v964 = vld [vmem:[%s5 + $0x8] sm:$0xff]
  %v965 = vld [vmem:[%s5 + $0x10] sm:$0xff]
  %v966 = vld [vmem:[%s5 + $0x18] sm:$0xff]
  %v967 = vld [vmem:[%s5 + $0x20] sm:$0xff]
  %v968 = vld [vmem:[%s5 + $0x28] sm:$0xff]
  %v969 = vld [vmem:[%s5 + $0x30] sm:$0xff]
  %v970 = vld [vmem:[%s5 + $0x38] sm:$0xff]
  %v971 = vld [vmem:[%s5 + $0x40] sm:$0xff]
  %v972 = vld [vmem:[%s5 + $0x48] sm:$0xff]
  %v973 = vld [vmem:[%s5 + $0x50] sm:$0xff]
  %v974 = vld [vmem:[%s5 + $0x58] sm:$0xff]
  %v975 = vld [vmem:[%s5 + $0x60] sm:$0xff]
  %v976 = vld [vmem:[%s5 + $0x68] sm:$0xff]
  %v977 = vld [vmem:[%s5 + $0x70] sm:$0xff]
  %v978 = vld [vmem:[%s5 + $0x78] sm:$0xff]
  %v979 = vld [vmem:[%s5 + $0x80] sm:$0xff]
  %v980 = vld [vmem:[%s5 + $0x88] sm:$0xff]
  %v981 = vld [vmem:[%s5 + $0x90] sm:$0xff]
  %v982 = vld [vmem:[%s5 + $0x98] sm:$0xff]
  %v983 = vld [vmem:[%s5 + $0xa0] sm:$0xff]
  %v984 = vld [vmem:[%s5 + $0xa8] sm:$0xff]
  %v985 = vld [vmem:[%s5 + $0xb0] sm:$0xff]
  %v986 = vld [vmem:[%s5 + $0xb8] sm:$0xff]
  %v987 = vld [vmem:[%s5 + $0xc0] sm:$0xff]
  %v988 = vld [vmem:[%s5 + $0xc8] sm:$0xff]
  %v989 = vld [vmem:[%s5 + $0xd0] sm:$0xff]
  %v990 = vld [vmem:[%s5 + $0xd8] sm:$0xff]
  %v991 = vld [vmem:[%s5 + $0xe0] sm:$0xff]
  %v992 = vld [vmem:[%s5 + $0xe8] sm:$0xff]
  %v993 = vld [vmem:[%s5 + $0xf0] sm:$0xff]
  %v994 = vld [vmem:[%s5 + $0xf8] sm:$0xff]
  %v995 = vld [vmem:[%s5 + $0x100] sm:$0xff]
  %v996 = vld [vmem:[%s5 + $0x108] sm:$0xff]
  %v997 = vld [vmem:[%s5 + $0x110] sm:$0xff]
  %v998 = vld [vmem:[%s5 + $0x118] sm:$0xff]
  %v999 = vld [vmem:[%s5 + $0x120] sm:$0xff]
  %v1000 = vld [vmem:[%s5 + $0x128] sm:$0xff]
  %v1001 = vld [vmem:[%s5 + $0x130] sm:$0xff]
  %v1002 = vld [vmem:[%s5 + $0x138] sm:$0xff]
  %v1003 = vld [vmem:[%s5 + $0x140] sm:$0xff]
  %v1004 = vld [vmem:[%s5 + $0x148] sm:$0xff]
  %v1005 = vld [vmem:[%s5 + $0x150] sm:$0xff]
  %v1006 = vld [vmem:[%s5 + $0x158] sm:$0xff]
  %v1007 = vld [vmem:[%s5 + $0x160] sm:$0xff]
  %v1008 = vld [vmem:[%s5 + $0x168] sm:$0xff]
  %v1009 = vld [vmem:[%s5 + $0x170] sm:$0xff]
  %v1010 = vld [vmem:[%s5 + $0x178] sm:$0xff]
  %v1011 = vld [vmem:[%s6] sm:$0x3]
  %v1013 = vlaneseq
  %v1014 = vshrl.u32 %v1013, 7
  %v1015 = vsub.s32 0, %v1014
  %v1016 = vrot.slane %v1011, %v1015
  %v1017 = vlaneseq
  %v1018 = vshrl.u32 %v1017, 7
  %v1019 = vsub.s32 1, %v1018
  %v1020 = vrot.slane %v1011, %v1019
  %v1071 = vunpack.c.l.b16 %v963
  %v1072 = vunpack.c.h.b16 %v963
  %v1073 = vunpack.c.l.b16 %v964
  %v1074 = vunpack.c.h.b16 %v964
  %v1075 = vunpack.c.l.b16 %v965
  %v1076 = vunpack.c.h.b16 %v965
  %v1077 = vunpack.c.l.b16 %v966
  %v1078 = vunpack.c.h.b16 %v966
  %v1079 = vunpack.c.l.b16 %v967
  %v1080 = vunpack.c.h.b16 %v967
  %v1081 = vunpack.c.l.b16 %v968
  %v1082 = vunpack.c.h.b16 %v968
  %v1083 = vunpack.c.l.b16 %v969
  %v1084 = vunpack.c.h.b16 %v969
  %v1085 = vunpack.c.l.b16 %v970
  %v1086 = vunpack.c.h.b16 %v970
  %v1087 = vunpack.c.l.b16 %v971
  %v1088 = vunpack.c.h.b16 %v971
  %v1089 = vunpack.c.l.b16 %v972
  %v1090 = vunpack.c.h.b16 %v972
  %v1091 = vunpack.c.l.b16 %v973
  %v1092 = vunpack.c.h.b16 %v973
  %v1093 = vunpack.c.l.b16 %v974
  %v1094 = vunpack.c.h.b16 %v974
  %v1095 = vunpack.c.l.b16 %v975
  %v1096 = vunpack.c.h.b16 %v975
  %v1097 = vunpack.c.l.b16 %v976
  %v1098 = vunpack.c.h.b16 %v976
  %v1099 = vunpack.c.l.b16 %v977
  %v1100 = vunpack.c.h.b16 %v977
  %v1101 = vunpack.c.l.b16 %v978
  %v1102 = vunpack.c.h.b16 %v978
  %v1103 = vunpack.c.l.b16 %v979
  %v1104 = vunpack.c.h.b16 %v979
  %v1105 = vunpack.c.l.b16 %v980
  %v1106 = vunpack.c.h.b16 %v980
  %v1107 = vunpack.c.l.b16 %v981
  %v1108 = vunpack.c.h.b16 %v981
  %v1109 = vunpack.c.l.b16 %v982
  %v1110 = vunpack.c.h.b16 %v982
  %v1111 = vunpack.c.l.b16 %v983
  %v1112 = vunpack.c.h.b16 %v983
  %v1113 = vunpack.c.l.b16 %v984
  %v1114 = vunpack.c.h.b16 %v984
  %v1115 = vunpack.c.l.b16 %v985
  %v1116 = vunpack.c.h.b16 %v985
  %v1117 = vunpack.c.l.b16 %v986
  %v1118 = vunpack.c.h.b16 %v986
  %v1119 = vunpack.c.l.b16 %v987
  %v1120 = vunpack.c.h.b16 %v987
  %v1121 = vunpack.c.l.b16 %v988
  %v1122 = vunpack.c.h.b16 %v988
  %v1123 = vunpack.c.l.b16 %v989
  %v1124 = vunpack.c.h.b16 %v989
  %v1125 = vunpack.c.l.b16 %v990
  %v1126 = vunpack.c.h.b16 %v990
  %v1127 = vunpack.c.l.b16 %v991
  %v1128 = vunpack.c.h.b16 %v991
  %v1129 = vunpack.c.l.b16 %v992
  %v1130 = vunpack.c.h.b16 %v992
  %v1131 = vunpack.c.l.b16 %v993
  %v1132 = vunpack.c.h.b16 %v993
  %v1133 = vunpack.c.l.b16 %v994
  %v1134 = vunpack.c.h.b16 %v994
  %v1135 = vunpack.c.l.b16 %v995
  %v1136 = vunpack.c.h.b16 %v995
  %v1137 = vunpack.c.l.b16 %v996
  %v1138 = vunpack.c.h.b16 %v996
  %v1139 = vunpack.c.l.b16 %v997
  %v1140 = vunpack.c.h.b16 %v997
  %v1141 = vunpack.c.l.b16 %v998
  %v1142 = vunpack.c.h.b16 %v998
  %v1143 = vunpack.c.l.b16 %v999
  %v1144 = vunpack.c.h.b16 %v999
  %v1145 = vunpack.c.l.b16 %v1000
  %v1146 = vunpack.c.h.b16 %v1000
  %v1147 = vunpack.c.l.b16 %v1001
  %v1148 = vunpack.c.h.b16 %v1001
  %v1149 = vunpack.c.l.b16 %v1002
  %v1150 = vunpack.c.h.b16 %v1002
  %v1151 = vunpack.c.l.b16 %v1003
  %v1152 = vunpack.c.h.b16 %v1003
  %v1153 = vunpack.c.l.b16 %v1004
  %v1154 = vunpack.c.h.b16 %v1004
  %v1155 = vunpack.c.l.b16 %v1005
  %v1156 = vunpack.c.h.b16 %v1005
  %v1157 = vunpack.c.l.b16 %v1006
  %v1158 = vunpack.c.h.b16 %v1006
  %v1159 = vunpack.c.l.b16 %v1007
  %v1160 = vunpack.c.h.b16 %v1007
  %v1161 = vunpack.c.l.b16 %v1008
  %v1162 = vunpack.c.h.b16 %v1008
  %v1163 = vunpack.c.l.b16 %v1009
  %v1164 = vunpack.c.h.b16 %v1009
  %v1165 = vunpack.c.l.b16 %v1010
  %v1166 = vunpack.c.h.b16 %v1010
  %v1167 = vpack.c.b16 %v1073, %v1071
  %v1168 = vpack.c.b16 %v1074, %v1072
  %v1169 = vpack.c.b16 %v1077, %v1075
  %v1170 = vpack.c.b16 %v1078, %v1076
  %v1171 = vpack.c.b16 %v1081, %v1079
  %v1172 = vpack.c.b16 %v1082, %v1080
  %v1173 = vpack.c.b16 %v1085, %v1083
  %v1174 = vpack.c.b16 %v1086, %v1084
  %v1175 = vpack.c.b16 %v1089, %v1087
  %v1176 = vpack.c.b16 %v1090, %v1088
  %v1177 = vpack.c.b16 %v1093, %v1091
  %v1178 = vpack.c.b16 %v1094, %v1092
  %v1179 = vpack.c.b16 %v1097, %v1095
  %v1180 = vpack.c.b16 %v1098, %v1096
  %v1181 = vpack.c.b16 %v1101, %v1099
  %v1182 = vpack.c.b16 %v1102, %v1100
  %v1183 = vpack.c.b16 %v1105, %v1103
  %v1184 = vpack.c.b16 %v1106, %v1104
  %v1185 = vpack.c.b16 %v1109, %v1107
  %v1186 = vpack.c.b16 %v1110, %v1108
  %v1187 = vpack.c.b16 %v1113, %v1111
  %v1188 = vpack.c.b16 %v1114, %v1112
  %v1189 = vpack.c.b16 %v1117, %v1115
  %v1190 = vpack.c.b16 %v1118, %v1116
  %v1191 = vpack.c.b16 %v1121, %v1119
  %v1192 = vpack.c.b16 %v1122, %v1120
  %v1193 = vpack.c.b16 %v1125, %v1123
  %v1194 = vpack.c.b16 %v1126, %v1124
  %v1195 = vpack.c.b16 %v1129, %v1127
  %v1196 = vpack.c.b16 %v1130, %v1128
  %v1197 = vpack.c.b16 %v1133, %v1131
  %v1198 = vpack.c.b16 %v1134, %v1132
  %v1199 = vpack.c.b16 %v1137, %v1135
  %v1200 = vpack.c.b16 %v1138, %v1136
  %v1201 = vpack.c.b16 %v1141, %v1139
  %v1202 = vpack.c.b16 %v1142, %v1140
  %v1203 = vpack.c.b16 %v1145, %v1143
  %v1204 = vpack.c.b16 %v1146, %v1144
  %v1205 = vpack.c.b16 %v1149, %v1147
  %v1206 = vpack.c.b16 %v1150, %v1148
  %v1207 = vpack.c.b16 %v1153, %v1151
  %v1208 = vpack.c.b16 %v1154, %v1152
  %v1209 = vpack.c.b16 %v1157, %v1155
  %v1210 = vpack.c.b16 %v1158, %v1156
  %v1211 = vpack.c.b16 %v1161, %v1159
  %v1212 = vpack.c.b16 %v1162, %v1160
  %v1213 = vpack.c.b16 %v1165, %v1163
  %v1214 = vpack.c.b16 %v1166, %v1164
  %1263 = vmatprep.subr.bf16.mxu0 %v1168
  %1264 = vmatpush1.bf16.msra.mxu0 %v1167
  %1265 = vmatprep.subr.bf16.mxu0 %v1170
  %1266 = vmatpush1.bf16.msra.mxu0 %v1169
  %1267 = vmatprep.subr.bf16.mxu0 %v1172
  %1268 = vmatpush1.bf16.msra.mxu0 %v1171
  %1269 = vmatprep.subr.bf16.mxu0 %v1174
  %1270 = vmatpush1.bf16.msra.mxu0 %v1173
  %1271 = vmatprep.subr.bf16.mxu0 %v1176
  %1272 = vmatpush1.bf16.msra.mxu0 %v1175
  %1273 = vmatprep.subr.bf16.mxu0 %v1178
  %1274 = vmatpush1.bf16.msra.mxu0 %v1177
  %1275 = vmatprep.subr.bf16.mxu0 %v1180
  %1276 = vmatpush1.bf16.msra.mxu0 %v1179
  %1277 = vmatprep.subr.bf16.mxu0 %v1182
  %1278 = vmatpush1.bf16.msra.mxu0 %v1181
  %1279 = vmatprep.subr.bf16.mxu0 %v1184
  %1280 = vmatpush1.bf16.msra.mxu0 %v1183
  %1281 = vmatprep.subr.bf16.mxu0 %v1186
  %1282 = vmatpush1.bf16.msra.mxu0 %v1185
  %1283 = vmatprep.subr.bf16.mxu0 %v1188
  %1284 = vmatpush1.bf16.msra.mxu0 %v1187
  %1285 = vmatprep.subr.bf16.mxu0 %v1190
  %1286 = vmatpush1.bf16.msra.mxu0 %v1189
  %1287 = vmatprep.subr.bf16.mxu0 %v1192
  %1288 = vmatpush1.bf16.msra.mxu0 %v1191
  %1289 = vmatprep.subr.bf16.mxu0 %v1194
  %1290 = vmatpush1.bf16.msra.mxu0 %v1193
  %1291 = vmatprep.subr.bf16.mxu0 %v1196
  %1292 = vmatpush1.bf16.msra.mxu0 %v1195
  %1293 = vmatprep.subr.bf16.mxu0 %v1198
  %1294 = vmatpush1.bf16.msra.mxu0 %v1197
  %1295 = vmatprep.mubr.bf16.mxu0 %v961
  %1296 = vmatmul.mubr.bf16.gmra.mrb[0].mxu0 %v960
  %v1297 = vpop.f32.mrb[0].mxu0
  %v1298 = vadd.f32 %v1016, %v1297
  %v1299 = vpop.f32.mrb[0].mxu0
  %v1300 = vadd.f32 %v1020, %v1299
  %v1301 = vpop.f32.mrb[0].mxu0
  %v1302 = vpop.f32.mrb[0].mxu0
  %1303 = vdwg.mxu0
  %1304 = vmatprep.subr.bf16.mxu0 %v1200
  %1305 = vmatpush1.bf16.msra.mxu0 %v1199
  %1306 = vmatprep.subr.bf16.mxu0 %v1202
  %1307 = vmatpush1.bf16.msra.mxu0 %v1201
  %1308 = vmatprep.subr.bf16.mxu0 %v1204
  %1309 = vmatpush1.bf16.msra.mxu0 %v1203
  %1310 = vmatprep.subr.bf16.mxu0 %v1206
  %1311 = vmatpush1.bf16.msra.mxu0 %v1205
  %1312 = vmatprep.subr.bf16.mxu0 %v1208
  %1313 = vmatpush1.bf16.msra.mxu0 %v1207
  %1314 = vmatprep.subr.bf16.mxu0 %v1210
  %1315 = vmatpush1.bf16.msra.mxu0 %v1209
  %1316 = vmatprep.subr.bf16.mxu0 %v1212
  %1317 = vmatpush1.bf16.msra.mxu0 %v1211
  %1318 = vmatprep.subr.bf16.mxu0 %v1214
  %1319 = vmatpush1.bf16.msra.mxu0 %v1213
  %1320 = vmatprep.subr.bf16.mxu0 0
  %1321 = vmatpush1.bf16.msra.mxu0 0
  %1322 = vmatprep.subr.bf16.mxu0 0
  %1323 = vmatpush1.bf16.msra.mxu0 0
  %1324 = vmatprep.subr.bf16.mxu0 0
  %1325 = vmatpush1.bf16.msra.mxu0 0
  %1326 = vmatprep.subr.bf16.mxu0 0
  %1327 = vmatpush1.bf16.msra.mxu0 0
  %1328 = vmatprep.subr.bf16.mxu0 0
  %1329 = vmatpush1.bf16.msra.mxu0 0
  %1330 = vmatprep.subr.bf16.mxu0 0
  %1331 = vmatpush1.bf16.msra.mxu0 0
  %1332 = vmatprep.subr.bf16.mxu0 0
  %1333 = vmatpush1.bf16.msra.mxu0 0
  %1334 = vmatprep.subr.bf16.mxu0 0
  %1335 = vmatpush1.bf16.msra.mxu0 0
  %1336 = vmatprep.mubr.bf16.mxu0 0
  %1337 = vmatmul.mubr.bf16.gmra.mrb[0].mxu0 %v962
  %v1338 = vpop.f32.mrb[0].mxu0
  %v1339 = vadd.f32 %v1298, %v1338
  %v1340 = vpop.f32.mrb[0].mxu0
  %v1341 = vadd.f32 %v1300, %v1340
  %v1342 = vpop.f32.mrb[0].mxu0
  %v1343 = vpop.f32.mrb[0].mxu0
  %1344 = vdwg.mxu0
  %v1345 = vmax.f32 %v1339, 0.0
  %v1346 = vmax.f32 %v1341, 0.0
  %v1347 = vpack.c.bf16 %v1345, %v1345
  %v1348 = vpack.c.bf16 %v1346, %v1346
  %v1349 = vld [vmem:[%s7] sm:$0xf]
  %v1350 = vld [vmem:[%s7 + $0x4] sm:$0xf]
  %v1351 = vld [vmem:[%s7 + $0x8] sm:$0xf]
  %v1352 = vld [vmem:[%s7 + $0xc] sm:$0xf]
  %v1353 = vld [vmem:[%s7 + $0x10] sm:$0xf]
  %v1354 = vld [vmem:[%s7 + $0x14] sm:$0xf]
  %v1355 = vld [vmem:[%s7 + $0x18] sm:$0xf]
  %v1356 = vld [vmem:[%s7 + $0x1c] sm:$0xf]
  %v1357 = vld [vmem:[%s7 + $0x20] sm:$0xf]
  %v1358 = vld [vmem:[%s7 + $0x24] sm:$0xf]
  %v1359 = vld [vmem:[%s7 + $0x28] sm:$0xf]
  %v1360 = vld [vmem:[%s7 + $0x2c] sm:$0xf]
  %v1361 = vld [vmem:[%s7 + $0x30] sm:$0xf]
  %v1362 = vld [vmem:[%s7 + $0x34] sm:$0xf]
  %v1363 = vld [vmem:[%s7 + $0x38] sm:$0xf]
  %v1364 = vld [vmem:[%s7 + $0x3c] sm:$0xf]
  %v1365 = vld [vmem:[%s7 + $0x40] sm:$0xf]
  %v1366 = vld [vmem:[%s7 + $0x44] sm:$0xf]
  %v1367 = vld [vmem:[%s7 + $0x48] sm:$0xf]
  %v1368 = vld [vmem:[%s7 + $0x4c] sm:$0xf]
  %v1369 = vld [vmem:[%s7 + $0x50] sm:$0xf]
  %v1370 = vld [vmem:[%s7 + $0x54] sm:$0xf]
  %v1371 = vld [vmem:[%s7 + $0x58] sm:$0xf]
  %v1372 = vld [vmem:[%s7 + $0x5c] sm:$0xf]
  %v1373 = vld [vmem:[%s7 + $0x60] sm:$0xf]
  %v1374 = vld [vmem:[%s7 + $0x64] sm:$0xf]
  %v1375 = vld [vmem:[%s7 + $0x68] sm:$0xf]
  %v1376 = vld [vmem:[%s7 + $0x6c] sm:$0xf]
  %v1377 = vld [vmem:[%s7 + $0x70] sm:$0xf]
  %v1378 = vld [vmem:[%s7 + $0x74] sm:$0xf]
  %v1379 = vld [vmem:[%s7 + $0x78] sm:$0xf]
  %v1380 = vld [vmem:[%s7 + $0x7c] sm:$0xf]
  %v1381 = vld [vmem:[%s8] sm:$0x1]
  %v1383 = vlaneseq
  %v1384 = vshrl.u32 %v1383, 7
  %v1385 = vsub.s32 0, %v1384
  %v1386 = vrot.slane %v1381, %v1385
  %v1420 = vunpack.c.l.b16 %v1349
  %v1421 = vunpack.c.l.b16 %v1350
  %v1422 = vunpack.c.l.b16 %v1351
  %v1423 = vunpack.c.l.b16 %v1352
  %v1424 = vunpack.c.l.b16 %v1353
  %v1425 = vunpack.c.l.b16 %v1354
  %v1426 = vunpack.c.l.b16 %v1355
  %v1427 = vunpack.c.l.b16 %v1356
  %v1428 = vunpack.c.l.b16 %v1357
  %v1429 = vunpack.c.l.b16 %v1358
  %v1430 = vunpack.c.l.b16 %v1359
  %v1431 = vunpack.c.l.b16 %v1360
  %v1432 = vunpack.c.l.b16 %v1361
  %v1433 = vunpack.c.l.b16 %v1362
  %v1434 = vunpack.c.l.b16 %v1363
  %v1435 = vunpack.c.l.b16 %v1364
  %v1436 = vunpack.c.l.b16 %v1365
  %v1437 = vunpack.c.l.b16 %v1366
  %v1438 = vunpack.c.l.b16 %v1367
  %v1439 = vunpack.c.l.b16 %v1368
  %v1440 = vunpack.c.l.b16 %v1369
  %v1441 = vunpack.c.l.b16 %v1370
  %v1442 = vunpack.c.l.b16 %v1371
  %v1443 = vunpack.c.l.b16 %v1372
  %v1444 = vunpack.c.l.b16 %v1373
  %v1445 = vunpack.c.l.b16 %v1374
  %v1446 = vunpack.c.l.b16 %v1375
  %v1447 = vunpack.c.l.b16 %v1376
  %v1448 = vunpack.c.l.b16 %v1377
  %v1449 = vunpack.c.l.b16 %v1378
  %v1450 = vunpack.c.l.b16 %v1379
  %v1451 = vunpack.c.l.b16 %v1380
  %v1452 = vpack.c.b16 %v1421, %v1420
  %v1453 = vpack.c.b16 %v1423, %v1422
  %v1454 = vpack.c.b16 %v1425, %v1424
  %v1455 = vpack.c.b16 %v1427, %v1426
  %v1456 = vpack.c.b16 %v1429, %v1428
  %v1457 = vpack.c.b16 %v1431, %v1430
  %v1458 = vpack.c.b16 %v1433, %v1432
  %v1459 = vpack.c.b16 %v1435, %v1434
  %v1460 = vpack.c.b16 %v1437, %v1436
  %v1461 = vpack.c.b16 %v1439, %v1438
  %v1462 = vpack.c.b16 %v1441, %v1440
  %v1463 = vpack.c.b16 %v1443, %v1442
  %v1464 = vpack.c.b16 %v1445, %v1444
  %v1465 = vpack.c.b16 %v1447, %v1446
  %v1466 = vpack.c.b16 %v1449, %v1448
  %v1467 = vpack.c.b16 %v1451, %v1450
  %1484 = vmatprep.subr.bf16.mxu0 0
  %1485 = vmatpush1.bf16.msra.mxu0 %v1452
  %1486 = vmatprep.subr.bf16.mxu0 0
  %1487 = vmatpush1.bf16.msra.mxu0 %v1453
  %1488 = vmatprep.subr.bf16.mxu0 0
  %1489 = vmatpush1.bf16.msra.mxu0 %v1454
  %1490 = vmatprep.subr.bf16.mxu0 0
  %1491 = vmatpush1.bf16.msra.mxu0 %v1455
  %1492 = vmatprep.subr.bf16.mxu0 0
  %1493 = vmatpush1.bf16.msra.mxu0 %v1456
  %1494 = vmatprep.subr.bf16.mxu0 0
  %1495 = vmatpush1.bf16.msra.mxu0 %v1457
  %1496 = vmatprep.subr.bf16.mxu0 0
  %1497 = vmatpush1.bf16.msra.mxu0 %v1458
  %1498 = vmatprep.subr.bf16.mxu0 0
  %1499 = vmatpush1.bf16.msra.mxu0 %v1459
  %1500 = vmatprep.subr.bf16.mxu0 0
  %1501 = vmatpush1.bf16.msra.mxu0 %v1460
  %1502 = vmatprep.subr.bf16.mxu0 0
  %1503 = vmatpush1.bf16.msra.mxu0 %v1461
  %1504 = vmatprep.subr.bf16.mxu0 0
  %1505 = vmatpush1.bf16.msra.mxu0 %v1462
  %1506 = vmatprep.subr.bf16.mxu0 0
  %1507 = vmatpush1.bf16.msra.mxu0 %v1463
  %1508 = vmatprep.subr.bf16.mxu0 0
  %1509 = vmatpush1.bf16.msra.mxu0 %v1464
  %1510 = vmatprep.subr.bf16.mxu0 0
  %1511 = vmatpush1.bf16.msra.mxu0 %v1465
  %1512 = vmatprep.subr.bf16.mxu0 0
  %1513 = vmatpush1.bf16.msra.mxu0 %v1466
  %1514 = vmatprep.subr.bf16.mxu0 0
  %1515 = vmatpush1.bf16.msra.mxu0 %v1467
  %1516 = vmatprep.mubr.bf16.mxu0 %v1348
  %1517 = vmatmul.mubr.bf16.gmra.mrb[0].mxu0 %v1347
  %v1518 = vpop.f32.mrb[0].mxu0
  %v1519 = vadd.f32 %v1386, %v1518
  %v1520 = vpop.f32.mrb[0].mxu0
  %v1521 = vpop.f32.mrb[0].mxu0
  %v1522 = vpop.f32.mrb[0].mxu0
  %1523 = vdwg.mxu0
  %1524 = vst [vmem:[%s9] sm:$0xff] %v1519
  // Predicated region
  $region38: #{qnetwork_forward.1} parent=0 // pred_check
    _
  $region39: #{qnetwork_forward.1} parent=0 // pred_check_branch
    %1526 = sbr.rel (0) target = $region41
  $region40: #{qnetwork_forward.1} parent=0 // pred_region
    _
  $region41: #{qnetwork_forward.1} parent=0 // pred_fallthru
    _
  // Predicated region
  $region42: #{qnetwork_forward.1} parent=0 // pred_check
    _
  $region43: #{qnetwork_forward.1} parent=0 // pred_check_branch
    %1528 = sbr.rel (0) target = $region45
  $region44: #{qnetwork_forward.1} parent=0 // pred_region
    _
  $region45: #{qnetwork_forward.1} parent=0 // pred_fallthru
    _

</llo_original>
